<compile_context>
chip_gen: v7x
topology: tpu7x:2x2x1
jax: 0.10.0
libtpu: 0.0.40
codegen_flags: <defaults>
</compile_context>

<pallas_src>
import math
import numbers
import numpy as np
import jax
import jax.numpy as jnp
from jax import lax
from jax.experimental import pallas as pl
from jax.experimental.pallas import tpu as pltpu


# ---------------------------------------------------------------------------
# Weights (match the PyTorch module's quirky construction exactly)
# ---------------------------------------------------------------------------
def _gaussian_weights_2d(kernel_size=3, sigma=1.0, dim=2):
    """2-D kernel exactly as the PyTorch module builds it (reference only)."""
    if isinstance(kernel_size, numbers.Number):
        kernel_size = [kernel_size] * dim
    if isinstance(sigma, numbers.Number):
        sigma = [sigma] * dim
    kernel = np.ones((), dtype=np.float32)
    meshgrids = np.meshgrid(
        *[np.arange(s, dtype=np.float32) for s in kernel_size], indexing="ij"
    )
    for size, std, mgrid in zip(kernel_size, sigma, meshgrids):
        mean = (size - 1) / 2.0
        # NOTE: matches the module exactly: exp(-((x - mean) / (2*std))**2)
        kernel = kernel * (
            1.0 / (std * math.sqrt(2.0 * math.pi))
            * np.exp(-(((mgrid - mean) / (2.0 * std)) ** 2))
        )
    kernel = kernel / kernel.sum()
    return kernel.astype(np.float32)


def _gaussian_taps_1d(kernel_size=3, sigma=1.0, dim=2):
    """Separable 1-D taps; outer(taps_h, taps_w) == the module's 2-D kernel."""
    if isinstance(kernel_size, numbers.Number):
        kernel_size = [kernel_size] * dim
    if isinstance(sigma, numbers.Number):
        sigma = [sigma] * dim
    taps = []
    for size, std in zip(kernel_size, sigma):
        mean = (size - 1) / 2.0
        g = (1.0 / (std * math.sqrt(2.0 * math.pi))) * np.exp(
            -(((np.arange(size, dtype=np.float64) - mean) / (2.0 * std)) ** 2)
        )
        g = g / g.sum()
        taps.append(tuple(float(v) for v in g))
    return taps  # [taps_h, taps_w]


# ---------------------------------------------------------------------------
# Kernel
# ---------------------------------------------------------------------------
def _make_kernel(H, W, taps_h, taps_w):
    HW = H * W
    pd_h = (len(taps_h) - 1) // 2
    pd_w = (len(taps_w) - 1) // 2
    w_pow2 = (W & (W - 1)) == 0

    def kernel(x_ref, o_ref):
        # x_ref / o_ref: (cb, H*W) — lane-dense last dim, channel rows on sublanes.
        t = x_ref[...].astype(jnp.float32)

        # --- per-lane (h, w) coordinates and boundary masks, computed ONCE ---
        col = lax.broadcasted_iota(jnp.int32, t.shape, 1)
        if w_pow2:
            w_idx = col & (W - 1)
            h_idx = col >> (W.bit_length() - 1)
        else:
            # TODO(synk): non-power-of-2 W pays a multi-op integer div/mod on
            # the VPU; a 3-D iota + reshape would remove it if it ever matters.
            w_idx = col % W
            h_idx = col // W
        w_lo = [w_idx == c for c in range(pd_w)]
        w_hi = [w_idx == (W - 1 - c) for c in range(pd_w)]
        h_lo = [h_idx == c for c in range(pd_h)]
        h_hi = [h_idx == (H - 1 - c) for c in range(pd_h)]

        def sep_pass(arr, taps, lo_masks, hi_masks, size, stride):
            """1-D reflect-padded conv along the flattened (H*W) lane axis.

            arr:    (cb, H*W) f32 tile
            size:   axis extent (W or H)
            stride: lane stride of a +1 step along this axis (1 for w, W for h)
            """
            pd = (len(taps) - 1) // 2
            cache = {}

            def rolled(lane_shift):
                # value at lane (l + lane_shift) brought to lane l (cyclic).
                s = (-lane_shift) % HW
                if s == 0:
                    return arr
                if s not in cache:
                    cache[s] = pltpu.roll(arr, shift=s, axis=1)
                return cache[s]

            # Hoist the main-tap rolls: XLU work issued early overlaps the VPU
            # tap math and the incoming DMA (separate VLIW slots).
            main = {d: rolled(d * stride) for d in range(-pd, pd + 1)}

            def fixed(d):
                # Neighbor at offset d with reflect (no edge repeat) fix —
                # matches F.pad 'reflect'.  Boundary rolls hit the same cache.
                shifted = main[d]
                if d < 0:
                    for c in range(0, -d):
                        src = -(c + d)
                        shifted = jnp.where(lo_masks[c],
                                            rolled((src - c) * stride), shifted)
                elif d > 0:
                    for c in range(size - d, size):
                        src = 2 * (size - 1) - (c + d)
                        shifted = jnp.where(hi_masks[size - 1 - c],
                                            rolled((src - c) * stride), shifted)
                return shifted

            # Gaussian taps are symmetric (taps[pd-d] == taps[pd+d]):
            # one multiply per tap-pair instead of one per tap.
            acc = taps[pd] * arr
            for d in range(1, pd + 1):
                acc = acc + taps[pd + d] * (fixed(d) + fixed(-d))
            return acc

        hp = sep_pass(t, taps_w, w_lo, w_hi, W, 1)        # horizontal taps
        out = sep_pass(hp, taps_h, h_lo, h_hi, H, W)      # vertical taps
        o_ref[...] = out.astype(o_ref.dtype)

    return kernel


# ---------------------------------------------------------------------------
# Block sizing (generation-aware)
# ---------------------------------------------------------------------------
def _vmem_capacity_bytes():
    """Physical per-core VMEM; conservative v7x value if the query fails."""
    try:
        info = pltpu.get_tpu_info()
        v = getattr(info, "vmem_capacity_bytes", None)
        if v:
            return int(v)
    except Exception:
        pass
    return 64 * 1024 * 1024


def _pick_channel_block(nc, hw, itemsize, budget_bytes):
    """Rows of the (N*C, H*W) view processed per grid step.

    Targets 2–4 MiB blocks (footprint ~13x block with double-buffered in/out
    plus f32 intermediates), never drops below one sublane tile of rows or a
    ~512 KiB block, and prefers >=8 grid steps (>=2 per TensorCore) when the
    problem is large enough for pipelining to matter.
    """
    sub = max(8, 32 // itemsize)            # sublane multiple for this dtype
    row_bytes = hw * itemsize
    target = max(min(4 << 20, budget_bytes // 13), sub * row_bytes)
    min_block = 512 << 10

    if nc <= sub or nc * row_bytes <= max(min_block, target):
        # Whole problem is one comfortable block (or too few rows to tile).
        # TODO(synk): if row_bytes itself is multi-MiB, tile H with a halo.
        return nc

    cb = max(sub, (target // row_bytes) // sub * sub)
    cb = min(cb, nc)

    # Prefer >=8 grid steps so both TCs of a dual-TC chip get a pipelined loop,
    # but never shrink below a sublane tile or a ~512 KiB block.
    while -(-nc // cb) < 8:
        new_cb = ((cb // 2 + sub - 1) // sub) * sub
        if new_cb < sub or new_cb >= cb or new_cb * row_bytes < min_block:
            break
        cb = new_cb
    return cb


def _block_spec(shape, index_map, buffers=None):
    if buffers is not None and hasattr(pl, "Buffered"):
        try:
            return pl.BlockSpec(shape, index_map,
                                pipeline_mode=pl.Buffered(buffers))
        except TypeError:  # older/newer API without pipeline_mode
            pass
    return pl.BlockSpec(shape, index_map)


# ---------------------------------------------------------------------------
# Wrapper
# ---------------------------------------------------------------------------
def gaussian_smoothing(x, channels=None, kernel_size=3, sigma=1.0,
                       padding_mode="reflect"):
    """Forward pass of GaussianSmoothing (dim=2). Returns a 1-tuple like the module.

    `channels` is accepted for signature parity but unused (the depthwise
    Gaussian weights are identical for every channel).
    """
    if padding_mode != "reflect":
        # TODO(synk): only 'reflect' (the module default) is fused in-kernel.
        raise NotImplementedError("only padding_mode='reflect' is supported")

    taps_h, taps_w = _gaussian_taps_1d(kernel_size, sigma, dim=2)
    for taps in (taps_h, taps_w):
        assert len(taps) % 2 == 1, "only odd kernel sizes give a centered window"
        assert np.allclose(taps, taps[::-1]), "Gaussian taps must be symmetric"
    pd_h = (len(taps_h) - 1) // 2
    pd_w = (len(taps_w) - 1) // 2

    N, C, H, W = x.shape
    # reflect padding (and the in-kernel roll+mask boundary fix) requires the
    # pad to stay strictly inside the axis extent.
    assert pd_h <= H - 1 and pd_w <= W - 1, "pad must be < spatial extent for 'reflect'"

    NC, HW = N * C, H * W
    itemsize = jnp.dtype(x.dtype).itemsize
    budget = min(_vmem_capacity_bytes() * 3 // 4, 96 << 20)   # ~48 MiB v7x, ~96 MiB v5e/v6e
    cb = _pick_channel_block(NC, HW, itemsize, budget)
    g = int(pl.cdiv(NC, cb))

    # Pure row-major reshape — no transpose, no padded HBM copy.
    x2 = x.reshape(NC, HW)

    in_spec = _block_spec((cb, HW), lambda i: (i, 0),
                          buffers=3 if 2 <= g <= 4 else None)
    out_spec = pl.BlockSpec((cb, HW), lambda i: (i, 0))

    cost = pl.CostEstimate(
        flops=int(2 * (len(taps_h) + len(taps_w)) * NC * HW),
        transcendentals=0,
        bytes_accessed=int(2 * NC * HW * itemsize),
    )

    out = pl.pallas_call(
        _make_kernel(H, W, taps_h, taps_w),
        out_shape=jax.ShapeDtypeStruct((NC, HW), x.dtype),
        grid=(g,),
        in_specs=[in_spec],
        out_specs=out_spec,
        compiler_params=pltpu.CompilerParams(
            dimension_semantics=("parallel",),
            vmem_limit_bytes=int(budget),
        ),
        cost_estimate=cost,
    )(x2)
    return (out.reshape(N, C, H, W),)


# ---------------------------------------------------------------------------
# Pure-JAX reference (depthwise conv on reflect-padded input, module weights)
# ---------------------------------------------------------------------------
def _reference(x, kernel_size=3, sigma=1.0):
    N, C, H, W = x.shape
    pd = kernel_size // 2
    xp = jnp.pad(x, ((0, 0), (0, 0), (pd, pd), (pd, pd)), mode="reflect")
    w2d = jnp.asarray(_gaussian_weights_2d(kernel_size, sigma, dim=2))
    w = jnp.tile(w2d[None, None, :, :], (C, 1, 1, 1))  # (C, 1, kH, kW)
    return lax.conv_general_dilated(
        xp, w, window_strides=(1, 1), padding="VALID",
        dimension_numbers=("NCHW", "OIHW", "NCHW"),
        feature_group_count=C,
    )


if __name__ == "__main__":
    key = jax.random.PRNGKey(0)

    # Primary check — the module's typical small-plane use case.
    N, C, H, W = 2, 4, 16, 16
    x = jax.random.normal(key, (N, C, H, W), dtype=jnp.float32)
    (y,) = gaussian_smoothing(x, channels=C, kernel_size=3, sigma=1.0)
    y = jax.block_until_ready(y)
    y_ref = jax.block_until_ready(_reference(x))
    assert y.shape == (N, C, H, W)
    assert jnp.allclose(y, y_ref, atol=1e-5, rtol=1e-5)

    # Secondary check — channel count not a sublane multiple, H != W.
    x2 = jax.random.normal(jax.random.PRNGKey(0), (1, 3, 8, 16), dtype=jnp.float32)
    (y2,) = gaussian_smoothing(x2, channels=3, kernel_size=3, sigma=1.0)
    y2 = jax.block_until_ready(y2)
    y2_ref = jax.block_until_ready(_reference(x2))
    assert jnp.allclose(y2, y2_ref, atol=1e-5, rtol=1e-5)

    print("KERNEL_OK")
</pallas_src>

<mosaic_0001>
module attributes {stable_mosaic.version = 11 : i64} {
  func.func @kernel(%arg0: i32, %arg1: memref<8x256xf32, #tpu.memory_space<vmem>>, %arg2: memref<8x256xf32, #tpu.memory_space<vmem>>) attributes {dimension_semantics = [#tpu.dimension_semantics<parallel>], iteration_bounds = array<i64: 1>, scalar_prefetch = 0 : i64, scratch_operands = 0 : i64, tpu.core_type = #tpu.core_type<tc>, window_params = [{transform_indices = @transform_0, window_bounds = array<i64: 8, 256>}, {transform_indices = @transform_1, window_bounds = array<i64: 8, 256>}]} {
    %c0 = arith.constant 0 : index
    %c0_0 = arith.constant 0 : index
    %0 = vector.load %arg1[%c0, %c0_0] : memref<8x256xf32, #tpu.memory_space<vmem>>, vector<8x256xf32>
    %1 = tpu.iota {dimensions = array<i32: 1>} : vector<8x256xi32>
    %c15_i32 = arith.constant 15 : i32
    %2 = vector.broadcast %c15_i32 : i32 to vector<8x256xi32>
    %3 = arith.andi %1, %2 : vector<8x256xi32>
    %c4_i32 = arith.constant 4 : i32
    %4 = vector.broadcast %c4_i32 : i32 to vector<8x256xi32>
    %5 = arith.shrsi %1, %4 : vector<8x256xi32>
    %c0_i32 = arith.constant 0 : i32
    %6 = vector.broadcast %c0_i32 : i32 to vector<8x256xi32>
    %7 = arith.cmpi eq, %3, %6 : vector<8x256xi32>
    %c15_i32_1 = arith.constant 15 : i32
    %8 = vector.broadcast %c15_i32_1 : i32 to vector<8x256xi32>
    %9 = arith.cmpi eq, %3, %8 : vector<8x256xi32>
    %c0_i32_2 = arith.constant 0 : i32
    %10 = vector.broadcast %c0_i32_2 : i32 to vector<8x256xi32>
    %11 = arith.cmpi eq, %5, %10 : vector<8x256xi32>
    %c15_i32_3 = arith.constant 15 : i32
    %12 = vector.broadcast %c15_i32_3 : i32 to vector<8x256xi32>
    %13 = arith.cmpi eq, %5, %12 : vector<8x256xi32>
    %c1_i32 = arith.constant 1 : i32
    %14 = tpu.dynamic_rotate %0 by %c1_i32 dim 1 : vector<8x256xf32>, i32 -> vector<8x256xf32>
    %c255_i32 = arith.constant 255 : i32
    %15 = tpu.dynamic_rotate %0 by %c255_i32 dim 1 : vector<8x256xf32>, i32 -> vector<8x256xf32>
    %cst = arith.constant 0.3909913 : f32
    %16 = vector.broadcast %cst : f32 to vector<8x256xf32>
    %17 = arith.mulf %16, %0 : vector<8x256xf32>
    %18 = arith.select %9, %14, %15 : vector<8x256xi1>, vector<8x256xf32>
    %19 = arith.select %7, %15, %14 : vector<8x256xi1>, vector<8x256xf32>
    %20 = arith.addf %18, %19 : vector<8x256xf32>
    %cst_4 = arith.constant 0.304504335 : f32
    %21 = vector.broadcast %cst_4 : f32 to vector<8x256xf32>
    %22 = arith.mulf %21, %20 : vector<8x256xf32>
    %23 = arith.addf %17, %22 : vector<8x256xf32>
    %c16_i32 = arith.constant 16 : i32
    %24 = tpu.dynamic_rotate %23 by %c16_i32 dim 1 : vector<8x256xf32>, i32 -> vector<8x256xf32>
    %c240_i32 = arith.constant 240 : i32
    %25 = tpu.dynamic_rotate %23 by %c240_i32 dim 1 : vector<8x256xf32>, i32 -> vector<8x256xf32>
    %cst_5 = arith.constant 0.3909913 : f32
    %26 = vector.broadcast %cst_5 : f32 to vector<8x256xf32>
    %27 = arith.mulf %26, %23 : vector<8x256xf32>
    %28 = arith.select %13, %24, %25 : vector<8x256xi1>, vector<8x256xf32>
    %29 = arith.select %11, %25, %24 : vector<8x256xi1>, vector<8x256xf32>
    %30 = arith.addf %28, %29 : vector<8x256xf32>
    %cst_6 = arith.constant 0.304504335 : f32
    %31 = vector.broadcast %cst_6 : f32 to vector<8x256xf32>
    %32 = arith.mulf %31, %30 : vector<8x256xf32>
    %33 = arith.addf %27, %32 : vector<8x256xf32>
    %c0_7 = arith.constant 0 : index
    %c0_8 = arith.constant 0 : index
    %34 = vector.load %arg2[%c0_7, %c0_8] : memref<8x256xf32, #tpu.memory_space<vmem>>, vector<8x256xf32>
    tpu.vector_store %arg2[%c0_7, %c0_8], %33 {strides = array<i32>} : memref<8x256xf32, #tpu.memory_space<vmem>>, vector<8x256xf32>,
    return
  }
  func.func @transform_0(%arg0: i32) -> (i32, i32) {
    %c0_i32 = arith.constant 0 : i32
    %c0_i32_0 = arith.constant 0 : i32
    return %arg0, %c0_i32 : i32, i32
  }
  func.func @transform_1(%arg0: i32) -> (i32, i32) {
    %c0_i32 = arith.constant 0 : i32
    %c0_i32_0 = arith.constant 0 : i32
    return %arg0, %c0_i32 : i32, i32
  }
}

</mosaic_0001>

<llo_original>
// kernel: tpu_custom_call.1
$region0: #{tpu_custom_call.1}
  #allocation0 [shape = 'u32[]', space=smem, size = 0x4, offset = 0x4, fixed_abs, tag = 'smem constant byte address 0x4 - core index']
  #allocation1 [shape = 'u32[144,128]{1,0:T(1,128)}', space=vmem, size = 0x12000, scoped, tag = 'internal scratch']
  %s0 = inlined_call_operand.hbm [shape: f32[8,256], index: 0, kind: input, shape index: {}]
  %s1 = inlined_call_operand.hbm [shape: f32[8,256], index: 1, kind: output, shape index: {}]
  %s2 = sld [smem:[#allocation0]]
  $region18: #{tpu_custom_call.1} parent=0
    _
  %s4 = ssub.s32 1, %s2
  %s5 = scalar_select 0, %s4, %s2
  $region1: #{tpu_custom_call.1} parent=0
    #allocation2 [shape = 'u8[8192]{0}', space=vmem, size = 0x2000, scoped, tag = 'input window, operand 0, single buffered']
    #allocation3 [shape = 's32[1]{0}', space=sflag, size = 0x4, scoped, tag = 'scoped memory for tpu_custom_call.1']
    #allocation4 [shape = 's32[1]{0}', space=sflag, size = 0x4, scoped, tag = 'scoped memory for tpu_custom_call.1']
    #allocation5 [shape = 'u8[8192]{0}', space=vmem, size = 0x2000, scoped, tag = 'output window, operand 0, single buffered']
    %6 = vsyncpa [#allocation3], 0
    %7 = vsyncpa [#allocation4], 0
    // Predicated region
    $region2: #{tpu_custom_call.1} parent=1 // pred_check
      _
    $region3: #{tpu_custom_call.1} parent=1 // pred_check_branch
      %9 = sbr.rel (0) target = $region5
    $region4: #{tpu_custom_call.1} parent=1 // pred_region
      %s11 = ssub.s32 256, 256
      %12 = vsyncadd [#allocation3], %s11
      %s14 = sshll.u32 [#allocation2], 4
      %s15 = int_to_ptr.vmem [resolvable:$true] %s14
      %17 = dma.hbm_to_vmem [thread:$0]  %s0, 256, %s15, [#allocation3]
    $region5: #{tpu_custom_call.1} parent=1 // pred_fallthru
      _
    // Predicated region
    $region6: #{tpu_custom_call.1} parent=1 // pred_check
      _
    $region7: #{tpu_custom_call.1} parent=1 // pred_check_branch
      %19 = sbr.rel (0) target = $region9
    $region8: #{tpu_custom_call.1} parent=1 // pred_region
      %20 = dma.done [#allocation3], 256
    $region9: #{tpu_custom_call.1} parent=1 // pred_fallthru
      _
    %v21 = vld [vmem:[#allocation2] sm:$0xff]
    %v22 = vld [vmem:[#allocation2 + $0x8] sm:$0xff]
    %v23 = vlaneseq
    %v24 = vand.u32 %v23, 127
    %v25 = vadd.s32 %v24, 128
    %v26 = vand.u32 %v24, 15
    %v27 = vand.u32 %v25, 15
    %v28 = vshra.s32 %v24, 4
    %v29 = vshra.s32 %v25, 4
    %vm30 = vcmp.eq.s32.totalorder %v26, 0
    %vm31 = vcmp.eq.s32.totalorder %v27, 0
    %vm32 = vcmp.eq.s32.totalorder %v26, 15
    %vm33 = vcmp.eq.s32.totalorder %v27, 15
    %vm34 = vcmp.eq.s32.totalorder %v28, 0
    %vm35 = vcmp.eq.s32.totalorder %v29, 0
    %vm36 = vcmp.eq.s32.totalorder %v28, 15
    %vm37 = vcmp.eq.s32.totalorder %v29, 15
    %38 = vrot.lane.b32.xlu0 %v21, 1
    %v39 = vpop.permute.xlu0 %38
    %40 = vrot.lane.b32.xlu0 %v22, 1
    %v41 = vpop.permute.xlu0 %40
    %vm42 = vcmp.lt.s32.totalorder %v24, 1
    %v43 = vsel %vm42, %v39, %v41
    %v44 = vsel %vm42, %v41, %v39
    %45 = vrot.lane.b32.xlu0 %v21, 127
    %v46 = vpop.permute.xlu0 %45
    %47 = vrot.lane.b32.xlu0 %v22, 127
    %v48 = vpop.permute.xlu0 %47
    %vm49 = vcmp.lt.s32.totalorder %v24, 127
    %v50 = vsel %vm49, %v46, %v48
    %v51 = vsel %vm49, %v48, %v46
    %v52 = vmul.f32 %v21, 0.3909913
    %v53 = vmul.f32 %v22, 0.3909913
    %v54 = vsel %vm32, %v44, %v50
    %v55 = vsel %vm33, %v43, %v51
    %v56 = vsel %vm30, %v50, %v44
    %v57 = vsel %vm31, %v51, %v43
    %v58 = vadd.f32 %v54, %v56
    %v59 = vadd.f32 %v55, %v57
    %v60 = vmul.f32 %v58, 0.30450433
    %v61 = vmul.f32 %v59, 0.30450433
    %v62 = vadd.f32 %v52, %v60
    %v63 = vadd.f32 %v53, %v61
    %64 = vrot.lane.b32.xlu0 %v62, 16
    %v65 = vpop.permute.xlu0 %64
    %66 = vrot.lane.b32.xlu0 %v63, 16
    %v67 = vpop.permute.xlu0 %66
    %vm68 = vcmp.lt.s32.totalorder %v24, 16
    %v69 = vsel %vm68, %v65, %v67
    %v70 = vsel %vm68, %v67, %v65
    %71 = vrot.lane.b32.xlu0 %v62, 112
    %v72 = vpop.permute.xlu0 %71
    %73 = vrot.lane.b32.xlu0 %v63, 112
    %v74 = vpop.permute.xlu0 %73
    %vm75 = vcmp.lt.s32.totalorder %v24, 112
    %v76 = vsel %vm75, %v72, %v74
    %v77 = vsel %vm75, %v74, %v72
    %v78 = vmul.f32 %v62, 0.3909913
    %v79 = vmul.f32 %v63, 0.3909913
    %v80 = vsel %vm36, %v70, %v76
    %v81 = vsel %vm37, %v69, %v77
    %v82 = vsel %vm34, %v76, %v70
    %v83 = vsel %vm35, %v77, %v69
    %v84 = vadd.f32 %v80, %v82
    %v85 = vadd.f32 %v81, %v83
    %v86 = vmul.f32 %v84, 0.30450433
    %v87 = vmul.f32 %v85, 0.30450433
    %v88 = vadd.f32 %v78, %v86
    %v89 = vadd.f32 %v79, %v87
    %90 = vst [vmem:[#allocation5] sm:$0xff] %v88
    %91 = vst [vmem:[#allocation5 + $0x8] sm:$0xff] %v89
    // Predicated region
    $region10: #{tpu_custom_call.1} parent=1 // pred_check
      _
    $region11: #{tpu_custom_call.1} parent=1 // pred_check_branch
      %93 = sbr.rel (0) target = $region13
    $region12: #{tpu_custom_call.1} parent=1 // pred_region
      %s95 = ssub.s32 256, 256
      %96 = vsyncadd [#allocation4], %s95
      %s98 = sshll.u32 [#allocation5], 4
      %s99 = int_to_ptr.vmem [resolvable:$true] %s98
      %101 = dma.vmem_to_hbm [thread:$0]  %s99, 256, %s1, [#allocation4]
    $region13: #{tpu_custom_call.1} parent=1 // pred_fallthru
      _
    // Predicated region
    $region14: #{tpu_custom_call.1} parent=1 // pred_check
      _
    $region15: #{tpu_custom_call.1} parent=1 // pred_check_branch
      %103 = sbr.rel (0) target = $region17
    $region16: #{tpu_custom_call.1} parent=1 // pred_region
      %104 = dma.done [#allocation4], 256
    $region17: #{tpu_custom_call.1} parent=1 // pred_fallthru
      _
    %105 = vsyncpa [#allocation3], 1
    %106 = vsyncpa [#allocation4], 1

</llo_original>
